<compile_context>
chip_gen: v7x
topology: tpu7x:2x2x1
jax: 0.10.0
libtpu: 0.0.40
codegen_flags: <defaults>
</compile_context>

<pallas_src>
import functools

import jax
import jax.numpy as jnp
from jax.experimental import pallas as pl
from jax.experimental.pallas import tpu as pltpu

LANE = 128  # TPU lane width


def _round_up(x, m):
    return ((x + m - 1) // m) * m


def mlp_kernel(x_ref, w1_ref, b1_ref, w2_ref, b2_ref, w3_ref, b3_ref, o_ref,
               acc_ref, *, f_total, f_tile):
    """Grid = (batch_tiles, feature_tiles).  Axis 1 is the layer-1 reduction."""
    k = pl.program_id(1)

    # Init the layer-1 accumulator at the start of each feature reduction.
    @pl.when(k == 0)
    def _():
        acc_ref[...] = jnp.zeros_like(acc_ref)

    # In-kernel cast: f32 tile straight from HBM -> bf16 MXU operand.
    x = x_ref[...].astype(jnp.bfloat16)
    w1 = w1_ref[...]

    if f_total % f_tile != 0:
        # The last feature tile is partial: the tail of the VMEM window holds
        # stale garbage (possibly NaN/Inf).  Zero it on BOTH operands so it
        # cannot contaminate the accumulator.  For non-last tiles limit >= f_tile,
        # so the mask is a numeric no-op; the VPU cost is hidden under the DMAs.
        limit = f_total - k * f_tile
        xcol = jax.lax.broadcasted_iota(jnp.int32, x.shape, 1)
        x = jnp.where(xcol < limit, x, 0.0)
        wrow = jax.lax.broadcasted_iota(jnp.int32, w1.shape, 0)
        w1 = jnp.where(wrow < limit, w1, 0.0)

    # Layer 1 partial matmul: (tb, tf) @ (tf, 128), f32 accumulation.
    acc_ref[...] += jnp.dot(x, w1, preferred_element_type=jnp.float32)

    # Finalize: bias+ReLU, then layers 2 and 3 (tiny, fully resident), write output.
    @pl.when(k == pl.num_programs(1) - 1)
    def _():
        h1 = jnp.maximum(acc_ref[...] + b1_ref[...], 0.0).astype(jnp.bfloat16)
        h2 = jnp.dot(h1, w2_ref[...], preferred_element_type=jnp.float32)
        h2 = jnp.maximum(h2 + b2_ref[...], 0.0).astype(jnp.bfloat16)
        logits = jnp.dot(h2, w3_ref[...], preferred_element_type=jnp.float32) + b3_ref[...]
        o_ref[...] = logits.astype(o_ref.dtype)


def pack_params(params):
    """One-time weight packing (call OUTSIDE the hot loop / training step).

    Casts weights to bf16 and zero-pads the hidden-2 / class dims to 128 lanes.
    Biases stay f32 (added after f32 accumulation).  Weights are stored
    (in_features, out_features) = PyTorch weight.T.
    """
    w1, b1, w2, b2, w3, b3 = params
    F, H1 = w1.shape
    H2 = w2.shape[1]
    C = w3.shape[1]
    H1p = _round_up(H1, LANE)
    H2p = _round_up(H2, LANE)
    Cp = _round_up(C, LANE)
    w1p = jnp.zeros((F, H1p), jnp.bfloat16).at[:, :H1].set(w1.astype(jnp.bfloat16))
    b1p = jnp.zeros((1, H1p), jnp.float32).at[:, :H1].set(b1.reshape(1, H1).astype(jnp.float32))
    w2p = jnp.zeros((H1p, H2p), jnp.bfloat16).at[:H1, :H2].set(w2.astype(jnp.bfloat16))
    b2p = jnp.zeros((1, H2p), jnp.float32).at[:, :H2].set(b2.reshape(1, H2).astype(jnp.float32))
    w3p = jnp.zeros((H2p, Cp), jnp.bfloat16).at[:H2, :C].set(w3.astype(jnp.bfloat16))
    b3p = jnp.zeros((1, Cp), jnp.float32).at[:, :C].set(b3.reshape(1, C).astype(jnp.float32))
    return (w1p, b1p, w2p, b2p, w3p, b3p)


@functools.partial(jax.jit, static_argnames=("num_classes", "tile_b", "tile_f", "out_dtype"))
def rating_classifier_forward(x, packed_params, *, num_classes=6, tile_b=512,
                              tile_f=4096, out_dtype=jnp.float32):
    """Fused 3-layer MLP forward.

    x: (B, F) float32 (or bf16) TF-IDF features -- used as-is, no wrapper copy.
    packed_params: output of pack_params() (pack once, reuse every call).
    tile_b: batch tile; rounded to a multiple of 16 and halved when B <= tile_b
            so v7x's two TensorCores both get a tile.  512 works on v5e/v6e/v7x.
    tile_f: layer-1 reduction tile; rounded to a multiple of 128, capped at F.
    out_dtype: logits dtype.  f32 matches PyTorch; bf16 halves output writeback
               (only worth it for very small vocabularies).
    Note: MXU operands are bf16, so logits carry ~3 significant digits of
    operand-rounding error even with out_dtype=f32.
    """
    w1p, b1p, w2p, b2p, w3p, b3p = packed_params
    B, F = x.shape
    H1p = w1p.shape[1]
    H2p = w2p.shape[1]
    Cp = w3p.shape[1]
    assert w1p.shape[0] == F, "packed W1 feature dim must match x"

    # Batch tile: multiple of 16 (bf16 sublane packing); guarantee >= 2 tiles
    # when possible so the "parallel" batch axis feeds both v7x TensorCores.
    tb = min(tile_b, B)
    if B <= tile_b:
        tb = max(16, (B + 1) // 2)
    tb = _round_up(tb, 16)

    # Feature tile: multiple of 128 lanes, never larger than (rounded-up) F.
    tf = _round_up(max(1, min(tile_f, F)), LANE)

    grid = (pl.cdiv(B, tb), pl.cdiv(F, tf))
    const = pl.Buffered(1)  # constant blocks: single buffer, fetched once

    kernel = functools.partial(mlp_kernel, f_total=F, f_tile=tf)

    out = pl.pallas_call(
        kernel,
        out_shape=jax.ShapeDtypeStruct((B, Cp), out_dtype),
        grid_spec=pltpu.PrefetchScalarGridSpec(
            num_scalar_prefetch=0,
            grid=grid,
            in_specs=[
                pl.BlockSpec((tb, tf), lambda i, k: (i, k)),                         # x tile (streamed)
                pl.BlockSpec((tf, H1p), lambda i, k: (k, 0)),                        # W1 tile (streamed over F)
                pl.BlockSpec((1, H1p), lambda i, k: (0, 0), pipeline_mode=const),    # b1
                pl.BlockSpec((H1p, H2p), lambda i, k: (0, 0), pipeline_mode=const),  # W2
                pl.BlockSpec((1, H2p), lambda i, k: (0, 0), pipeline_mode=const),    # b2
                pl.BlockSpec((H2p, Cp), lambda i, k: (0, 0), pipeline_mode=const),   # W3
                pl.BlockSpec((1, Cp), lambda i, k: (0, 0), pipeline_mode=const),     # b3
            ],
            out_specs=pl.BlockSpec((tb, Cp), lambda i, k: (i, 0)),
            scratch_shapes=[pltpu.VMEM((tb, H1p), jnp.float32)],                     # layer-1 accumulator
        ),
        compiler_params=pltpu.CompilerParams(
            dimension_semantics=("parallel", "arbitrary"),
            vmem_limit_bytes=48 * 1024 * 1024,
        ),
    )(x, w1p, b1p, w2p, b2p, w3p, b3p)

    return out[:, :num_classes]


def init_params(key, input_size, num_classes=6):
    """Deterministic synthetic params; shapes mirror the PyTorch module (stored as W.T)."""
    k1, k2, k3, k4, k5, k6 = jax.random.split(key, 6)
    w1 = jax.random.normal(k1, (input_size, 128), jnp.float32) * 0.05
    b1 = jax.random.normal(k2, (1, 128), jnp.float32) * 0.05
    w2 = jax.random.normal(k3, (128, 64), jnp.float32) * 0.05
    b2 = jax.random.normal(k4, (1, 64), jnp.float32) * 0.05
    w3 = jax.random.normal(k5, (64, num_classes), jnp.float32) * 0.05
    b3 = jax.random.normal(k6, (1, num_classes), jnp.float32) * 0.05
    return (w1, b1, w2, b2, w3, b3)


def reference_forward_f32(x, params):
    """Pure f32 reference (PyTorch semantics)."""
    w1, b1, w2, b2, w3, b3 = params
    h1 = jnp.maximum(x @ w1 + b1, 0.0)
    h2 = jnp.maximum(h1 @ w2 + b2, 0.0)
    return h2 @ w3 + b3


def reference_forward(x, params):
    """Reference mirroring the kernel's precision (bf16 operands, f32 accumulation)."""
    w1, b1, w2, b2, w3, b3 = params
    xb = x.astype(jnp.bfloat16)
    h1 = jnp.maximum(
        jnp.dot(xb, w1.astype(jnp.bfloat16), preferred_element_type=jnp.float32) + b1, 0.0
    ).astype(jnp.bfloat16)
    h2 = jnp.maximum(
        jnp.dot(h1, w2.astype(jnp.bfloat16), preferred_element_type=jnp.float32) + b2, 0.0
    ).astype(jnp.bfloat16)
    return jnp.dot(h2, w3.astype(jnp.bfloat16), preferred_element_type=jnp.float32) + b3


if __name__ == "__main__":
    key = jax.random.PRNGKey(0)
    kx, kp = jax.random.split(key)

    # Small, deliberately non-aligned shapes: B=30 (partial batch tile),
    # F=500 (partial feature tile + multi-step reduction), 6 classes (padded lanes).
    batch = 30
    input_size = 500       # TF-IDF vocabulary size (synthetic)
    num_classes = 6

    x = jax.random.normal(kx, (batch, input_size), jnp.float32)
    params = init_params(kp, input_size, num_classes)
    packed = pack_params(params)   # one-time weight packing (NOT per call)

    ref = reference_forward(x, params)
    ref32 = reference_forward_f32(x, params)

    # (1) Small tiles: grid (2, 2) -> exercises partial batch tile, partial
    #     feature tile (in-kernel mask), and the multi-step reduction path.
    out = rating_classifier_forward(x, packed, num_classes=num_classes,
                                    tile_b=16, tile_f=256)
    out = jax.block_until_ready(out)
    assert out.shape == (batch, num_classes)
    max_err = float(jnp.max(jnp.abs(out - ref)))
    assert jnp.allclose(out, ref, atol=2e-3, rtol=2e-3), \
        f"mismatch vs bf16 reference (max abs err {max_err})"
    assert jnp.allclose(out, ref32, atol=5e-2, rtol=5e-2), "mismatch vs f32 reference"

    # (2) Default (large) tiles: single reduction step + automatic batch-tile split.
    out2 = rating_classifier_forward(x, packed, num_classes=num_classes)
    out2 = jax.block_until_ready(out2)
    max_err2 = float(jnp.max(jnp.abs(out2 - ref)))
    assert jnp.allclose(out2, ref, atol=2e-3, rtol=2e-3), \
        f"mismatch vs bf16 reference at default tiles (max abs err {max_err2})"

    print("KERNEL_OK")
</pallas_src>

<mosaic_0001>
module attributes {stable_mosaic.version = 11 : i64} {
  func.func @mlp_kernel(%arg0: i32, %arg1: i32, %arg2: memref<16x256xf32, #tpu.memory_space<vmem>>, %arg3: memref<256x128xbf16, #tpu.memory_space<vmem>>, %arg4: memref<1x128xf32, #tpu.memory_space<vmem>>, %arg5: memref<128x128xbf16, #tpu.memory_space<vmem>>, %arg6: memref<1x128xf32, #tpu.memory_space<vmem>>, %arg7: memref<128x128xbf16, #tpu.memory_space<vmem>>, %arg8: memref<1x128xf32, #tpu.memory_space<vmem>>, %arg9: memref<16x128xf32, #tpu.memory_space<vmem>>, %arg10: memref<16x128xf32, #tpu.memory_space<vmem>>) attributes {dimension_semantics = [#tpu.dimension_semantics<parallel>, #tpu.dimension_semantics<arbitrary>], iteration_bounds = array<i64: 2, 2>, scalar_prefetch = 0 : i64, scratch_operands = 1 : i64, tpu.core_type = #tpu.core_type<tc>, window_params = [{transform_indices = @transform_0, window_bounds = array<i64: 16, 256>}, {transform_indices = @transform_1, window_bounds = array<i64: 256, 128>}, {pipeline_mode = #tpu.pipeline_mode<synchronous>, transform_indices = @transform_2, window_bounds = array<i64: 1, 128>}, {pipeline_mode = #tpu.pipeline_mode<synchronous>, transform_indices = @transform_3, window_bounds = array<i64: 128, 128>}, {pipeline_mode = #tpu.pipeline_mode<synchronous>, transform_indices = @transform_4, window_bounds = array<i64: 1, 128>}, {pipeline_mode = #tpu.pipeline_mode<synchronous>, transform_indices = @transform_5, window_bounds = array<i64: 128, 128>}, {pipeline_mode = #tpu.pipeline_mode<synchronous>, transform_indices = @transform_6, window_bounds = array<i64: 1, 128>}, {transform_indices = @transform_7, window_bounds = array<i64: 16, 128>}]} {
    %c0_i32 = arith.constant 0 : i32
    %0 = arith.cmpi eq, %arg1, %c0_i32 : i32
    %1 = arith.extui %0 : i1 to i32
    %c0_i32_0 = arith.constant 0 : i32
    %2 = arith.cmpi ne, %1, %c0_i32_0 : i32
    scf.if %2 {
      %cst_11 = arith.constant 0.000000e+00 : f32
      %27 = vector.broadcast %cst_11 : f32 to vector<16x128xf32>
      %c0_12 = arith.constant 0 : index
      %c0_13 = arith.constant 0 : index
      %28 = vector.load %arg10[%c0_12, %c0_13] : memref<16x128xf32, #tpu.memory_space<vmem>>, vector<16x128xf32>
      tpu.vector_store %arg10[%c0_12, %c0_13], %27 {strides = array<i32>} : memref<16x128xf32, #tpu.memory_space<vmem>>, vector<16x128xf32>,
    } else {
    }
    %c0 = arith.constant 0 : index
    %c0_1 = arith.constant 0 : index
    %3 = vector.load %arg2[%c0, %c0_1] : memref<16x256xf32, #tpu.memory_space<vmem>>, vector<16x256xf32>
    %4 = arith.truncf %3 : vector<16x256xf32> to vector<16x256xbf16>
    %c0_2 = arith.constant 0 : index
    %c0_3 = arith.constant 0 : index
    %5 = vector.load %arg3[%c0_2, %c0_3] : memref<256x128xbf16, #tpu.memory_space<vmem>>, vector<256x128xbf16>
    %c256_i32 = arith.constant 256 : i32
    %6 = arith.muli %arg1, %c256_i32 : i32
    %c500_i32 = arith.constant 500 : i32
    %7 = arith.subi %c500_i32, %6 : i32
    %8 = tpu.iota {dimensions = array<i32: 1>} : vector<16x256xi32>
    %9 = vector.broadcast %7 : i32 to vector<16x256xi32>
    %10 = arith.cmpi slt, %8, %9 : vector<16x256xi32>
    %cst = arith.constant 0.000000e+00 : f32
    %11 = arith.truncf %cst : f32 to bf16
    %12 = vector.broadcast %11 : bf16 to vector<16x256xbf16>
    %13 = arith.select %10, %4, %12 : vector<16x256xi1>, vector<16x256xbf16>
    %14 = tpu.iota {dimensions = array<i32: 0>} : vector<256x128xi32>
    %15 = vector.broadcast %7 : i32 to vector<256x128xi32>
    %16 = arith.cmpi slt, %14, %15 : vector<256x128xi32>
    %cst_4 = arith.constant 0.000000e+00 : f32
    %17 = arith.truncf %cst_4 : f32 to bf16
    %18 = vector.broadcast %17 : bf16 to vector<256x128xbf16>
    %19 = arith.select %16, %5, %18 : vector<256x128xi1>, vector<256x128xbf16>
    %c0_5 = arith.constant 0 : index
    %c0_6 = arith.constant 0 : index
    %20 = vector.load %arg10[%c0_5, %c0_6] : memref<16x128xf32, #tpu.memory_space<vmem>>, vector<16x128xf32>
    %cst_7 = arith.constant dense<0.000000e+00> : vector<16x128xf32>
    %21 = tpu.matmul %13, %19, %cst_7 {dimension_numbers = #tpu.dot_dimension_numbers<[1], [0], [0], [1], [0, 0, 1, 1], [], []>} : vector<16x256xbf16>, vector<256x128xbf16>, vector<16x128xf32> -> vector<16x128xf32>
    %22 = arith.addf %20, %21 : vector<16x128xf32>
    %c0_8 = arith.constant 0 : index
    %c0_9 = arith.constant 0 : index
    %23 = vector.load %arg10[%c0_8, %c0_9] : memref<16x128xf32, #tpu.memory_space<vmem>>, vector<16x128xf32>
    tpu.vector_store %arg10[%c0_8, %c0_9], %22 {strides = array<i32>} : memref<16x128xf32, #tpu.memory_space<vmem>>, vector<16x128xf32>,
    %c1_i32 = arith.constant 1 : i32
    %24 = arith.cmpi eq, %arg1, %c1_i32 : i32
    %25 = arith.extui %24 : i1 to i32
    %c0_i32_10 = arith.constant 0 : i32
    %26 = arith.cmpi ne, %25, %c0_i32_10 : i32
    scf.if %26 {
      %c0_11 = arith.constant 0 : index
      %c0_12 = arith.constant 0 : index
      %27 = vector.load %arg10[%c0_11, %c0_12] : memref<16x128xf32, #tpu.memory_space<vmem>>, vector<16x128xf32>
      %c0_13 = arith.constant 0 : index
      %c0_14 = arith.constant 0 : index
      %28 = vector.load %arg4[%c0_13, %c0_14] : memref<1x128xf32, #tpu.memory_space<vmem>>, vector<1x128xf32>
      %29 = vector.broadcast %28 : vector<1x128xf32> to vector<16x128xf32>
      %30 = arith.addf %27, %29 : vector<16x128xf32>
      %cst_15 = arith.constant 0.000000e+00 : f32
      %31 = vector.broadcast %cst_15 : f32 to vector<16x128xf32>
      %32 = arith.maximumf %30, %31 : vector<16x128xf32>
      %33 = arith.truncf %32 : vector<16x128xf32> to vector<16x128xbf16>
      %c0_16 = arith.constant 0 : index
      %c0_17 = arith.constant 0 : index
      %34 = vector.load %arg5[%c0_16, %c0_17] : memref<128x128xbf16, #tpu.memory_space<vmem>>, vector<128x128xbf16>
      %cst_18 = arith.constant dense<0.000000e+00> : vector<16x128xf32>
      %35 = tpu.matmul %33, %34, %cst_18 {dimension_numbers = #tpu.dot_dimension_numbers<[1], [0], [0], [1], [0, 0, 1, 1], [], []>} : vector<16x128xbf16>, vector<128x128xbf16>, vector<16x128xf32> -> vector<16x128xf32>
      %c0_19 = arith.constant 0 : index
      %c0_20 = arith.constant 0 : index
      %36 = vector.load %arg6[%c0_19, %c0_20] : memref<1x128xf32, #tpu.memory_space<vmem>>, vector<1x128xf32>
      %37 = vector.broadcast %36 : vector<1x128xf32> to vector<16x128xf32>
      %38 = arith.addf %35, %37 : vector<16x128xf32>
      %cst_21 = arith.constant 0.000000e+00 : f32
      %39 = vector.broadcast %cst_21 : f32 to vector<16x128xf32>
      %40 = arith.maximumf %38, %39 : vector<16x128xf32>
      %41 = arith.truncf %40 : vector<16x128xf32> to vector<16x128xbf16>
      %c0_22 = arith.constant 0 : index
      %c0_23 = arith.constant 0 : index
      %42 = vector.load %arg7[%c0_22, %c0_23] : memref<128x128xbf16, #tpu.memory_space<vmem>>, vector<128x128xbf16>
      %cst_24 = arith.constant dense<0.000000e+00> : vector<16x128xf32>
      %43 = tpu.matmul %41, %42, %cst_24 {dimension_numbers = #tpu.dot_dimension_numbers<[1], [0], [0], [1], [0, 0, 1, 1], [], []>} : vector<16x128xbf16>, vector<128x128xbf16>, vector<16x128xf32> -> vector<16x128xf32>
      %c0_25 = arith.constant 0 : index
      %c0_26 = arith.constant 0 : index
      %44 = vector.load %arg8[%c0_25, %c0_26] : memref<1x128xf32, #tpu.memory_space<vmem>>, vector<1x128xf32>
      %45 = vector.broadcast %44 : vector<1x128xf32> to vector<16x128xf32>
      %46 = arith.addf %43, %45 : vector<16x128xf32>
      %c0_27 = arith.constant 0 : index
      %c0_28 = arith.constant 0 : index
      %47 = vector.load %arg9[%c0_27, %c0_28] : memref<16x128xf32, #tpu.memory_space<vmem>>, vector<16x128xf32>
      tpu.vector_store %arg9[%c0_27, %c0_28], %46 {strides = array<i32>} : memref<16x128xf32, #tpu.memory_space<vmem>>, vector<16x128xf32>,
    } else {
    }
    return
  }
  func.func @transform_0(%arg0: i32, %arg1: i32) -> (i32, i32) {
    %c0_i32 = arith.constant 0 : i32
    return %arg0, %arg1 : i32, i32
  }
  func.func @transform_1(%arg0: i32, %arg1: i32) -> (i32, i32) {
    %c0_i32 = arith.constant 0 : i32
    %c0_i32_0 = arith.constant 0 : i32
    return %arg1, %c0_i32 : i32, i32
  }
  func.func @transform_2(%arg0: i32, %arg1: i32) -> (i32, i32) {
    %c0_i32 = arith.constant 0 : i32
    %c0_i32_0 = arith.constant 0 : i32
    %c0_i32_1 = arith.constant 0 : i32
    return %c0_i32, %c0_i32_0 : i32, i32
  }
  func.func @transform_3(%arg0: i32, %arg1: i32) -> (i32, i32) {
    %c0_i32 = arith.constant 0 : i32
    %c0_i32_0 = arith.constant 0 : i32
    %c0_i32_1 = arith.constant 0 : i32
    return %c0_i32, %c0_i32_0 : i32, i32
  }
  func.func @transform_4(%arg0: i32, %arg1: i32) -> (i32, i32) {
    %c0_i32 = arith.constant 0 : i32
    %c0_i32_0 = arith.constant 0 : i32
    %c0_i32_1 = arith.constant 0 : i32
    return %c0_i32, %c0_i32_0 : i32, i32
  }
  func.func @transform_5(%arg0: i32, %arg1: i32) -> (i32, i32) {
    %c0_i32 = arith.constant 0 : i32
    %c0_i32_0 = arith.constant 0 : i32
    %c0_i32_1 = arith.constant 0 : i32
    return %c0_i32, %c0_i32_0 : i32, i32
  }
  func.func @transform_6(%arg0: i32, %arg1: i32) -> (i32, i32) {
    %c0_i32 = arith.constant 0 : i32
    %c0_i32_0 = arith.constant 0 : i32
    %c0_i32_1 = arith.constant 0 : i32
    return %c0_i32, %c0_i32_0 : i32, i32
  }
  func.func @transform_7(%arg0: i32, %arg1: i32) -> (i32, i32) {
    %c0_i32 = arith.constant 0 : i32
    %c0_i32_0 = arith.constant 0 : i32
    return %arg0, %c0_i32 : i32, i32
  }
}

</mosaic_0001>

<llo_original>
// kernel: rating_classifier_forward.1
$region0: #{rating_classifier_forward.1}
  #allocation0 [shape = 'u32[]', space=smem, size = 0x4, offset = 0x4, fixed_abs, tag = 'smem constant byte address 0x4 - core index']
  #allocation1 [shape = 'u32[144,128]{1,0:T(1,128)}', space=vmem, size = 0x12000, scoped, tag = 'internal scratch']
  #allocation2 [shape = 'f32[16,128]{1,0:T(8,128)}', space=vmem, size = 0x2000, scoped, tag = 'scratch operand']
  %s0 = inlined_call_operand.hbm [shape: f32[30,500], index: 0, kind: input, shape index: {}]
  %s1 = inlined_call_operand.hbm [shape: bf16[500,128], index: 1, kind: input, shape index: {}]
  %s2 = inlined_call_operand.vmem [shape: f32[1,128], index: 2, kind: input, shape index: {}]
  %s3 = inlined_call_operand.hbm [shape: bf16[128,128], index: 3, kind: input, shape index: {}]
  %s4 = inlined_call_operand.vmem [shape: f32[1,128], index: 4, kind: input, shape index: {}]
  %s5 = inlined_call_operand.hbm [shape: bf16[128,128], index: 5, kind: input, shape index: {}]
  %s6 = inlined_call_operand.vmem [shape: f32[1,128], index: 6, kind: input, shape index: {}]
  %s7 = inlined_call_operand.vmem [shape: f32[30,128], index: 7, kind: output, shape index: {}]
  %s8 = sld [smem:[#allocation0]]
  $region85: #{rating_classifier_forward.1} parent=0
    _
  %s10 = ssub.s32 1, %s8
  %s11 = scalar_select 0, %s10, %s8
  $region1: #{rating_classifier_forward.1} parent=0
    #allocation3 [shape = 'u8[32768]{0}', space=vmem, size = 0x8000, scoped, tag = 'input window, operand 0']
    #allocation4 [shape = 's32[2]{0}', space=sflag, size = 0x8, scoped, tag = 'scoped memory for rating_classifier_forward.1']
    #allocation5 [shape = 'u8[131072]{0}', space=vmem, size = 0x20000, scoped, tag = 'input window, operand 1']
    #allocation6 [shape = 's32[2]{0}', space=sflag, size = 0x8, scoped, tag = 'scoped memory for rating_classifier_forward.1']
    #allocation7 [shape = 'u8[32768]{0}', space=vmem, size = 0x8000, scoped, tag = 'input window, operand 3, single buffered']
    #allocation8 [shape = 'u8[32768]{0}', space=vmem, size = 0x8000, scoped, tag = 'input window, operand 5, single buffered']
    #allocation9 [shape = 's32[1]{0}', space=sflag, size = 0x4, scoped, tag = 'scoped memory for rating_classifier_forward.1']
    %12 = vsyncpa [#allocation4], 0
    %s13 = scalar_lea.sflag [#allocation4], 1
    %14 = vsyncpa %s13, 0
    %15 = vsyncpa [#allocation6], 0
    %s16 = scalar_lea.sflag [#allocation6], 1
    %17 = vsyncpa %s16, 0
    %18 = vsyncpa [#allocation9], 0
    loop: start=0, step=1, limit=6
    $region2: #{rating_classifier_forward.1} parent=1 // loop_pre_header
      _
    $region3: #{rating_classifier_forward.1} parent=1 // loop_header
      %s20 = sphi 0, %s24
      %p21 = scmp.ge.s32.totalorder %s20, 6
      %s27 = sphi 0, %s39
      %s28 = sphi 0, %s35
      %s29 = sphi 0, %s27
      %s30 = sphi 0, %s28
      %s31 = sphi 0, %s29
      %s32 = sphi 0, %s30
      %s44 = sphi 0, %s46
      %s47 = sphi 0, %s44
      %s48 = sphi 0, %s47
      %s64 = sphi 0, %s48
      %s70 = sphi 0, %s72
      %s73 = sphi 0, %s70
      %s74 = sphi 0, %s73
      %s90 = sphi 0, %s74
      %s94 = sphi 0, %s94
      %s96 = sphi 0, %s94
      %s97 = sphi 0, %s96
      %s111 = sphi 0, %s97
      %s115 = sphi 0, %s115
      %s117 = sphi 0, %s115
      %s118 = sphi 0, %s117
      %s132 = sphi 0, %s118
      %s136 = sphi 0, %s136
      %s138 = sphi 0, %s136
      %s139 = sphi 0, %s138
      %s153 = sphi 0, %s139
      %s157 = sphi 0, %s157
      %s159 = sphi 0, %s157
      %s160 = sphi 0, %s159
      %s174 = sphi 0, %s160
      %s178 = sphi 0, %s178
      %s180 = sphi 0, %s178
      %s181 = sphi 0, %s180
      %s195 = sphi 0, %s181
      %s201 = sphi 0, %s203
      %s204 = sphi 0, %s201
      %s205 = sphi 0, %s204
      %s221 = sphi 0, %s205
    $region4: #{rating_classifier_forward.1} parent=1 // loop_header_branch
      %23 = sbr.rel (%p21) target = $region8
    $region5: #{rating_classifier_forward.1} parent=1 // loop_body
      %s25 = ssub.s32 %s20, 1
      %s26 = ssub.s32 %s20, 2
      %s33 = sadd.s32 1, %s28
      %p34 = scmp.ge.s32.totalorder %s33, 2
      %s35 = scalar_select %p34, 0, %s33
      %s36 = sadd.s32 1, %s27
      %s37 = scalar_select %p34, %s36, %s27
      %p38 = scmp.ge.s32.totalorder %s37, 2
      %s39 = scalar_select %p38, 0, %s37
      %s40 = ssub.s32 %s27, %s39
      %s41 = ssub.s32 %s28, %s35
      %s42 = sor.u32 %s40, %s41
      %p43 = scmp.eq.s32.totalorder %s42, 0
      %s45 = sadd.s32 %s44, 1
      %s46 = scalar_select %p43, %s44, %s45
      %p49 = pneg %p43
      %p50 = scmp.eq.s32.totalorder %s20, 3
      %p51 = por %p49, %p50
      %p52 = scmp.ne.s32.totalorder %s44, %s47
      %p53 = scmp.eq.s32.totalorder %s20, 0
      %p54 = por %p52, %p53
      %p55 = scmp.ne.s32.totalorder %s44, %s47
      %p56 = scmp.eq.s32.totalorder %s25, 3
      %p57 = por %p55, %p56
      %p58 = scmp.ne.s32.totalorder %s47, %s48
      %p59 = scmp.eq.s32.totalorder %s25, 0
      %p60 = por %p58, %p59
      %p61 = scmp.ne.s32.totalorder %s47, %s48
      %p62 = scmp.eq.s32.totalorder %s26, 3
      %p63 = por %p61, %p62
      %p65 = scmp.ne.s32.totalorder %s48, %s64
      %p66 = scmp.eq.s32.totalorder %s26, 0
      %p67 = por %p65, %p66
      %s68 = ssub.s32 %s28, %s35
      %p69 = scmp.eq.s32.totalorder %s68, 0
      %s71 = sadd.s32 %s70, 1
      %s72 = scalar_select %p69, %s70, %s71
      %p75 = pneg %p69
      %p76 = scmp.eq.s32.totalorder %s20, 3
      %p77 = por %p75, %p76
      %p78 = scmp.ne.s32.totalorder %s70, %s73
      %p79 = scmp.eq.s32.totalorder %s20, 0
      %p80 = por %p78, %p79
      %p81 = scmp.ne.s32.totalorder %s70, %s73
      %p82 = scmp.eq.s32.totalorder %s25, 3
      %p83 = por %p81, %p82
      %p84 = scmp.ne.s32.totalorder %s73, %s74
      %p85 = scmp.eq.s32.totalorder %s25, 0
      %p86 = por %p84, %p85
      %p87 = scmp.ne.s32.totalorder %s73, %s74
      %p88 = scmp.eq.s32.totalorder %s26, 3
      %p89 = por %p87, %p88
      %p91 = scmp.ne.s32.totalorder %s74, %s90
      %p92 = scmp.eq.s32.totalorder %s26, 0
      %p93 = por %p91, %p92
      %s95 = sadd.s32 %s94, 1
      %p98 = scmp.eq.s32.totalorder %s20, 3
      %p99 = scmp.ne.s32.totalorder %s94, %s96
      %p100 = scmp.eq.s32.totalorder %s20, 0
      %p101 = por %p99, %p100
      %p102 = scmp.ne.s32.totalorder %s94, %s96
      %p103 = scmp.eq.s32.totalorder %s25, 3
      %p104 = por %p102, %p103
      %p105 = scmp.ne.s32.totalorder %s96, %s97
      %p106 = scmp.eq.s32.totalorder %s25, 0
      %p107 = por %p105, %p106
      %p108 = scmp.ne.s32.totalorder %s96, %s97
      %p109 = scmp.eq.s32.totalorder %s26, 3
      %p110 = por %p108, %p109
      %p112 = scmp.ne.s32.totalorder %s97, %s111
      %p113 = scmp.eq.s32.totalorder %s26, 0
      %p114 = por %p112, %p113
      %s116 = sadd.s32 %s115, 1
      %p119 = scmp.eq.s32.totalorder %s20, 3
      %p120 = scmp.ne.s32.totalorder %s115, %s117
      %p121 = scmp.eq.s32.totalorder %s20, 0
      %p122 = por %p120, %p121
      %p123 = scmp.ne.s32.totalorder %s115, %s117
      %p124 = scmp.eq.s32.totalorder %s25, 3
      %p125 = por %p123, %p124
      %p126 = scmp.ne.s32.totalorder %s117, %s118
      %p127 = scmp.eq.s32.totalorder %s25, 0
      %p128 = por %p126, %p127
      %p129 = scmp.ne.s32.totalorder %s117, %s118
      %p130 = scmp.eq.s32.totalorder %s26, 3
      %p131 = por %p129, %p130
      %p133 = scmp.ne.s32.totalorder %s118, %s132
      %p134 = scmp.eq.s32.totalorder %s26, 0
      %p135 = por %p133, %p134
      %s137 = sadd.s32 %s136, 1
      %p140 = scmp.eq.s32.totalorder %s20, 3
      %p141 = scmp.ne.s32.totalorder %s136, %s138
      %p142 = scmp.eq.s32.totalorder %s20, 0
      %p143 = por %p141, %p142
      %p144 = scmp.ne.s32.totalorder %s136, %s138
      %p145 = scmp.eq.s32.totalorder %s25, 3
      %p146 = por %p144, %p145
      %p147 = scmp.ne.s32.totalorder %s138, %s139
      %p148 = scmp.eq.s32.totalorder %s25, 0
      %p149 = por %p147, %p148
      %p150 = scmp.ne.s32.totalorder %s138, %s139
      %p151 = scmp.eq.s32.totalorder %s26, 3
      %p152 = por %p150, %p151
      %p154 = scmp.ne.s32.totalorder %s139, %s153
      %p155 = scmp.eq.s32.totalorder %s26, 0
      %p156 = por %p154, %p155
      %s158 = sadd.s32 %s157, 1
      %p161 = scmp.eq.s32.totalorder %s20, 3
      %p162 = scmp.ne.s32.totalorder %s157, %s159
      %p163 = scmp.eq.s32.totalorder %s20, 0
      %p164 = por %p162, %p163
      %p165 = scmp.ne.s32.totalorder %s157, %s159
      %p166 = scmp.eq.s32.totalorder %s25, 3
      %p167 = por %p165, %p166
      %p168 = scmp.ne.s32.totalorder %s159, %s160
      %p169 = scmp.eq.s32.totalorder %s25, 0
      %p170 = por %p168, %p169
      %p171 = scmp.ne.s32.totalorder %s159, %s160
      %p172 = scmp.eq.s32.totalorder %s26, 3
      %p173 = por %p171, %p172
      %p175 = scmp.ne.s32.totalorder %s160, %s174
      %p176 = scmp.eq.s32.totalorder %s26, 0
      %p177 = por %p175, %p176
      %s179 = sadd.s32 %s178, 1
      %p182 = scmp.eq.s32.totalorder %s20, 3
      %p183 = scmp.ne.s32.totalorder %s178, %s180
      %p184 = scmp.eq.s32.totalorder %s20, 0
      %p185 = por %p183, %p184
      %p186 = scmp.ne.s32.totalorder %s178, %s180
      %p187 = scmp.eq.s32.totalorder %s25, 3
      %p188 = por %p186, %p187
      %p189 = scmp.ne.s32.totalorder %s180, %s181
      %p190 = scmp.eq.s32.totalorder %s25, 0
      %p191 = por %p189, %p190
      %p192 = scmp.ne.s32.totalorder %s180, %s181
      %p193 = scmp.eq.s32.totalorder %s26, 3
      %p194 = por %p192, %p193
      %p196 = scmp.ne.s32.totalorder %s181, %s195
      %p197 = scmp.eq.s32.totalorder %s26, 0
      %p198 = por %p196, %p197
      %s199 = ssub.s32 %s27, %s39
      %p200 = scmp.eq.s32.totalorder %s199, 0
      %s202 = sadd.s32 %s201, 1
      %s203 = scalar_select %p200, %s201, %s202
      %p206 = pneg %p200
      %p207 = scmp.eq.s32.totalorder %s20, 3
      %p208 = por %p206, %p207
      %p209 = scmp.ne.s32.totalorder %s201, %s204
      %p210 = scmp.eq.s32.totalorder %s20, 0
      %p211 = por %p209, %p210
      %p212 = scmp.ne.s32.totalorder %s201, %s204
      %p213 = scmp.eq.s32.totalorder %s25, 3
      %p214 = por %p212, %p213
      %p215 = scmp.ne.s32.totalorder %s204, %s205
      %p216 = scmp.eq.s32.totalorder %s25, 0
      %p217 = por %p215, %p216
      %p218 = scmp.ne.s32.totalorder %s204, %s205
      %p219 = scmp.eq.s32.totalorder %s26, 3
      %p220 = por %p218, %p219
      %p222 = scmp.ne.s32.totalorder %s205, %s221
      %p223 = scmp.eq.s32.totalorder %s26, 0
      %p224 = por %p222, %p223
      %p225 = scmp.le.s32.totalorder 1, %s20
      %p226 = scmp.lt.s32.totalorder %s20, 5
      %p227 = pnand %p225, %p226
      %p228 = pneg %p227
      // Predicated region
      $region9: #{rating_classifier_forward.1} parent=5 // pred_check
        _
      $region10: #{rating_classifier_forward.1} parent=5 // pred_check_branch
        %230 = sbr.rel (%p227) target = $region12
      $region11: #{rating_classifier_forward.1} parent=5 // pred_region
        %s231 = ssub.s32 %s20, 1
        // Predicated region
        $region13: #{rating_classifier_forward.1} parent=11 // pred_check
          %p232 = pneg %p107
        $region14: #{rating_classifier_forward.1} parent=11 // pred_check_branch
          %234 = sbr.rel (%p232) target = $region16
        $region15: #{rating_classifier_forward.1} parent=11 // pred_region
          _
        $region16: #{rating_classifier_forward.1} parent=11 // pred_fallthru
          _
        // Predicated region
        $region17: #{rating_classifier_forward.1} parent=11 // pred_check
          %p235 = pneg %p128
        $region18: #{rating_classifier_forward.1} parent=11 // pred_check_branch
          %237 = sbr.rel (%p235) target = $region20
        $region19: #{rating_classifier_forward.1} parent=11 // pred_region
          %s239 = ssub.s32 1024, 1024
          %240 = vsyncadd [#allocation6], %s239
          %s241 = sshll.u32 [#allocation7], 4
          %s242 = int_to_ptr.vmem [resolvable:$true] %s241
          %247 = dma.hbm_to_vmem [thread:$0]  %s3, 1024, %s242, [#allocation6], 64, 64, 4
        $region20: #{rating_classifier_forward.1} parent=11 // pred_fallthru
          _
        // Predicated region
        $region21: #{rating_classifier_forward.1} parent=11 // pred_check
          %p248 = pneg %p149
        $region22: #{rating_classifier_forward.1} parent=11 // pred_check_branch
          %250 = sbr.rel (%p248) target = $region24
        $region23: #{rating_classifier_forward.1} parent=11 // pred_region
          _
        $region24: #{rating_classifier_forward.1} parent=11 // pred_fallthru
          _
        // Predicated region
        $region25: #{rating_classifier_forward.1} parent=11 // pred_check
          %p251 = pneg %p170
        $region26: #{rating_classifier_forward.1} parent=11 // pred_check_branch
          %253 = sbr.rel (%p251) target = $region28
        $region27: #{rating_classifier_forward.1} parent=11 // pred_region
          %s255 = ssub.s32 1024, 1024
          %256 = vsyncadd [#allocation9], %s255
          %s257 = sshll.u32 [#allocation8], 4
          %s258 = int_to_ptr.vmem [resolvable:$true] %s257
          %263 = dma.hbm_to_vmem [thread:$0]  %s5, 1024, %s258, [#allocation9], 64, 64, 4
        $region28: #{rating_classifier_forward.1} parent=11 // pred_fallthru
          _
        // Predicated region
        $region29: #{rating_classifier_forward.1} parent=11 // pred_check
          %p264 = pneg %p191
        $region30: #{rating_classifier_forward.1} parent=11 // pred_check_branch
          %266 = sbr.rel (%p264) target = $region32
        $region31: #{rating_classifier_forward.1} parent=11 // pred_region
          _
        $region32: #{rating_classifier_forward.1} parent=11 // pred_fallthru
          _
      $region12: #{rating_classifier_forward.1} parent=5 // pred_fallthru
        _
      %p267 = scmp.lt.s32.totalorder %s20, 4
      // Predicated region
      $region33: #{rating_classifier_forward.1} parent=5 // pred_check
        %p268 = pneg %p267
      $region34: #{rating_classifier_forward.1} parent=5 // pred_check_branch
        %270 = sbr.rel (%p268) target = $region36
      $region35: #{rating_classifier_forward.1} parent=5 // pred_region
        // Predicated region
        $region37: #{rating_classifier_forward.1} parent=35 // pred_check
          %p271 = pneg %p54
        $region38: #{rating_classifier_forward.1} parent=35 // pred_check_branch
          %273 = sbr.rel (%p271) target = $region40
        $region39: #{rating_classifier_forward.1} parent=35 // pred_region
          %s274 = sand.u32 %s44, 1
          %s275 = scalar_lea.sflag [#allocation4], %s274
          %s276 = sand.u32 %s44, 1
          %s277 = smul.addr %s276, 32
          %s278 = scalar_lea.vmem [#allocation3], %s277
          %s279 = smul.u32 2, %s27
          %s280 = smul.u32 2, %s28
          %s282 = ssub.s32 512, 512
          %283 = vsyncadd %s275, %s282
          %s284 = smul.addr %s279, 4
          %s285 = sadd.s32 %s280, %s284
          %s286 = smul.addr %s285, 128
          %s287 = scalar_lea.hbm %s0, %s286
          %s288 = sshll.u32 %s278, 4
          %s289 = int_to_ptr.vmem [resolvable:$true] %s288
          %294 = dma.hbm_to_vmem [thread:$0]  %s287, 512, %s289, %s275, 512, 256, 16
        $region40: #{rating_classifier_forward.1} parent=35 // pred_fallthru
          _
        // Predicated region
        $region41: #{rating_classifier_forward.1} parent=35 // pred_check
          %p295 = pneg %p80
        $region42: #{rating_classifier_forward.1} parent=35 // pred_check_branch
          %297 = sbr.rel (%p295) target = $region44
        $region43: #{rating_classifier_forward.1} parent=35 // pred_region
          %s298 = sand.u32 %s20, 1
          %s299 = scalar_lea.sflag [#allocation6], %s298
          %s300 = sand.u32 %s70, 1
          %s301 = smul.addr %s300, 128
          %s302 = scalar_lea.vmem [#allocation5], %s301
          %s303 = smul.u32 32, %s28
          %s304 = ssub.s32 63, %s303
          %p305 = scmp.lt.s32.totalorder %s304, 32
          %s306 = scalar_select %p305, %s304, 32
          %s307 = smul.u32 64, %s306
          %s309 = ssub.s32 2048, %s307
          %310 = vsyncadd %s299, %s309
          %p311 = scmp.ne.s32.totalorder 0, %s307
          %s312 = smul.addr %s303, 64
          %s313 = scalar_lea.hbm %s1, %s312
          %s314 = smul.u32 4, %s306
          %s315 = sshll.u32 %s302, 4
          %s316 = int_to_ptr.vmem [resolvable:$true] %s315
          %s317 = sshll.u32 %s314, 4
          %321 = dma.hbm_to_vmem [thread:$0]  (%p311), %s313, %s317, %s316, %s299, 64, 64, 4
        $region44: #{rating_classifier_forward.1} parent=35 // pred_fallthru
          _
      $region36: #{rating_classifier_forward.1} parent=5 // pred_fallthru
        _
      %p322 = scmp.le.s32.totalorder 1, %s20
      %p323 = scmp.lt.s32.totalorder %s20, 5
      %p324 = pnand %p322, %p323
      %p325 = pneg %p324
      // Predicated region
      $region45: #{rating_classifier_forward.1} parent=5 // pred_check
        _
      $region46: #{rating_classifier_forward.1} parent=5 // pred_check_branch
        %327 = sbr.rel (%p324) target = $region48
      $region47: #{rating_classifier_forward.1} parent=5 // pred_region
        %s328 = ssub.s32 %s20, 1
        %s329 = sand.u32 %s47, 1
        %s330 = scalar_lea.sflag [#allocation4], %s329
        %s331 = sand.u32 %s47, 1
        %s332 = smul.addr %s331, 32
        %s333 = scalar_lea.vmem [#allocation3], %s332
        // Predicated region
        $region49: #{rating_classifier_forward.1} parent=47 // pred_check
          %p334 = pneg %p60
        $region50: #{rating_classifier_forward.1} parent=47 // pred_check_branch
          %336 = sbr.rel (%p334) target = $region52
        $region51: #{rating_classifier_forward.1} parent=47 // pred_region
          %337 = dma.done %s330, 512
        $region52: #{rating_classifier_forward.1} parent=47 // pred_fallthru
          _
        %s338 = sand.u32 %s25, 1
        %s339 = scalar_lea.sflag [#allocation6], %s338
        %s340 = sand.u32 %s73, 1
        %s341 = smul.addr %s340, 128
        %s342 = scalar_lea.vmem [#allocation5], %s341
        // Predicated region
        $region53: #{rating_classifier_forward.1} parent=47 // pred_check
          %p343 = pneg %p86
        $region54: #{rating_classifier_forward.1} parent=47 // pred_check_branch
          %345 = sbr.rel (%p343) target = $region56
        $region55: #{rating_classifier_forward.1} parent=47 // pred_region
          %346 = dma.done %s339, 2048
        $region56: #{rating_classifier_forward.1} parent=47 // pred_fallthru
          _
        // Predicated region
        $region57: #{rating_classifier_forward.1} parent=47 // pred_check
          %p347 = pneg %p128
        $region58: #{rating_classifier_forward.1} parent=47 // pred_check_branch
          %349 = sbr.rel (%p347) target = $region60
        $region59: #{rating_classifier_forward.1} parent=47 // pred_region
          %350 = dma.done [#allocation6], 1024
        $region60: #{rating_classifier_forward.1} parent=47 // pred_fallthru
          _
        // Predicated region
        $region61: #{rating_classifier_forward.1} parent=47 // pred_check
          %p351 = pneg %p170
        $region62: #{rating_classifier_forward.1} parent=47 // pred_check_branch
          %353 = sbr.rel (%p351) target = $region64
        $region63: #{rating_classifier_forward.1} parent=47 // pred_region
          %354 = dma.done [#allocation9], 1024
        $region64: #{rating_classifier_forward.1} parent=47 // pred_fallthru
          _
        %s355 = sand.u32 %s47, 1
        %s356 = scalar_lea.sflag [#allocation4], %s355
        %s357 = sand.u32 %s47, 1
        %s358 = smul.addr %s357, 32
        %s359 = scalar_lea.vmem [#allocation3], %s358
        %p360 = pneg %p60
        %p361 = pneg %p57
        %s362 = sand.u32 %s25, 1
        %s363 = scalar_lea.sflag [#allocation6], %s362
        %s364 = sand.u32 %s73, 1
        %s365 = smul.addr %s364, 128
        %s366 = scalar_lea.vmem [#allocation5], %s365
        %p367 = pneg %p86
        %p368 = pneg %p83
        %p369 = pneg %p107
        %p370 = pneg %p104
        %p371 = pneg %p128
        %p372 = pneg %p125
        %p373 = pneg %p149
        %p374 = pneg %p146
        %p375 = pneg %p170
        %p376 = pneg %p167
        %p377 = pneg %p191
        %p378 = pneg %p188
        %p379 = pneg %p217
        %p380 = pneg %p214
        %s381 = smul.u32 2, %s29
        %p382 = scmp.lt.s32.totalorder %s381, 3
        %s383 = scalar_select %p382, %s381, 3
        %s384 = smul.addr %s383, 8
        %s385 = scalar_lea.vmem %s7, %s384
        %s386 = smul.u32 2, %s29
        %s387 = smul.u32 2, %s30
        %s388 = smul.u32 32, %s30
        %s389 = ssub.s32 63, %s388
        %p390 = scmp.lt.s32.totalorder %s389, 32
        %s391 = scalar_select %p390, %s389, 32
        %s392 = smul.u32 64, %s391
        %s393 = smul.u32 2, %s29
        %p394 = scmp.lt.s32.totalorder %s393, 3
        %s395 = scalar_select %p394, %s393, 3
        %s396 = smul.addr %s395, 8
        %s397 = scalar_lea.vmem %s7, %s396
        %s398 = smul.u32 2, %s29
        %p402 = scmp.eq.s32.totalorder %s30, 0
        // Predicated region
        $region65: #{rating_classifier_forward.1} parent=47 // pred_check
          %p403 = pneg %p402
        $region66: #{rating_classifier_forward.1} parent=47 // pred_check_branch
          %405 = sbr.rel (%p403) target = $region68
        $region67: #{rating_classifier_forward.1} parent=47 // pred_region
          %406 = vst [vmem:[#allocation2] sm:$0xff] 0.0
          %407 = vst [vmem:[#allocation2 + $0x8] sm:$0xff] 0.0
        $region68: #{rating_classifier_forward.1} parent=47 // pred_fallthru
          _
        %v408 = vld [vmem:[%s333] sm:$0xff]
        %v409 = vld [vmem:[%s333 + $0x8] sm:$0xff]
        %v410 = vld [vmem:[%s333 + $0x10] sm:$0xff]
        %v411 = vld [vmem:[%s333 + $0x18] sm:$0xff]
        %v412 = vpack.c.bf16 %v410, %v408
        %v413 = vpack.c.bf16 %v411, %v409
        %v414 = vld [vmem:[%s342] sm:$0xf]
        %v415 = vld [vmem:[%s342 + $0x4] sm:$0xf]
        %v416 = vld [vmem:[%s342 + $0x8] sm:$0xf]
        %v417 = vld [vmem:[%s342 + $0xc] sm:$0xf]
        %v418 = vld [vmem:[%s342 + $0x10] sm:$0xf]
        %v419 = vld [vmem:[%s342 + $0x14] sm:$0xf]
        %v420 = vld [vmem:[%s342 + $0x18] sm:$0xf]
        %v421 = vld [vmem:[%s342 + $0x1c] sm:$0xf]
        %v422 = vld [vmem:[%s342 + $0x20] sm:$0xf]
        %v423 = vld [vmem:[%s342 + $0x24] sm:$0xf]
        %v424 = vld [vmem:[%s342 + $0x28] sm:$0xf]
        %v425 = vld [vmem:[%s342 + $0x2c] sm:$0xf]
        %v426 = vld [vmem:[%s342 + $0x30] sm:$0xf]
        %v427 = vld [vmem:[%s342 + $0x34] sm:$0xf]
        %v428 = vld [vmem:[%s342 + $0x38] sm:$0xf]
        %v429 = vld [vmem:[%s342 + $0x3c] sm:$0xf]
        %v430 = vld [vmem:[%s342 + $0x40] sm:$0xf]
        %v431 = vld [vmem:[%s342 + $0x44] sm:$0xf]
        %v432 = vld [vmem:[%s342 + $0x48] sm:$0xf]
        %v433 = vld [vmem:[%s342 + $0x4c] sm:$0xf]
        %v434 = vld [vmem:[%s342 + $0x50] sm:$0xf]
        %v435 = vld [vmem:[%s342 + $0x54] sm:$0xf]
        %v436 = vld [vmem:[%s342 + $0x58] sm:$0xf]
        %v437 = vld [vmem:[%s342 + $0x5c] sm:$0xf]
        %v438 = vld [vmem:[%s342 + $0x60] sm:$0xf]
        %v439 = vld [vmem:[%s342 + $0x64] sm:$0xf]
        %v440 = vld [vmem:[%s342 + $0x68] sm:$0xf]
        %v441 = vld [vmem:[%s342 + $0x6c] sm:$0xf]
        %v442 = vld [vmem:[%s342 + $0x70] sm:$0xf]
        %v443 = vld [vmem:[%s342 + $0x74] sm:$0xf]
        %v444 = vld [vmem:[%s342 + $0x78] sm:$0xf]
        %v445 = vld [vmem:[%s342 + $0x7c] sm:$0xf]
        %s446 = smul.u32 %s30, 256
        %s447 = ssub.s32 500, %s446
        %v448 = vlaneseq
        %v449 = vand.u32 %v448, 127
        %v450 = vadd.s32 %v449, 128
        %v451 = vstv %s447
        %vm452 = vcmp.lt.s32.totalorder %v449, %v451
        %vm453 = vcmp.lt.s32.totalorder %v450, %v451
        %vm454 = vmpackc.low %vm453, %vm452
        %v455 = vsel %vm454, 65537, 0
        %v456 = vlaneseq
        %v457 = vshrl.u32 %v456, 7
        %v458 = vsub.s32 0, %v457
        %v459 = vrot.slane %v455, %v458
        %v460 = vlaneseq
        %v461 = vshrl.u32 %v460, 7
        %v462 = vsub.s32 4, %v461
        %v463 = vrot.slane %v455, %v462
        %vm464 = vcmp.ne.s16.totalorder %v459, 0
        %vm465 = vcmp.ne.s16.totalorder %v463, 0
        %v466 = vsel %vm464, %v412, 0
        %v467 = vsel %vm465, %v413, 0
        %v468 = vlaneseq
        %v469 = vshrl.u32 %v468, 7
        %v470 = vadd.s32 %v469, 8
        %v471 = vadd.s32 %v469, 16
        %v472 = vadd.s32 %v469, 24
        %v473 = vadd.s32 %v469, 32
        %v474 = vadd.s32 %v469, 40
        %v475 = vadd.s32 %v469, 48
        %v476 = vadd.s32 %v469, 56
        %v477 = vadd.s32 %v469, 64
        %v478 = vadd.s32 %v469, 72
        %v479 = vadd.s32 %v469, 80
        %v480 = vadd.s32 %v469, 88
        %v481 = vadd.s32 %v469, 96
        %v482 = vadd.s32 %v469, 104
        %v483 = vadd.s32 %v469, 112
        %v484 = vadd.s32 %v469, 120
        %v485 = vadd.s32 %v469, 128
        %v486 = vadd.s32 %v469, 136
        %v487 = vadd.s32 %v469, 144
        %v488 = vadd.s32 %v469, 152
        %v489 = vadd.s32 %v469, 160
        %v490 = vadd.s32 %v469, 168
        %v491 = vadd.s32 %v469, 176
        %v492 = vadd.s32 %v469, 184
        %v493 = vadd.s32 %v469, 192
        %v494 = vadd.s32 %v469, 200
        %v495 = vadd.s32 %v469, 208
        %v496 = vadd.s32 %v469, 216
        %v497 = vadd.s32 %v469, 224
        %v498 = vadd.s32 %v469, 232
        %v499 = vadd.s32 %v469, 240
        %v500 = vadd.s32 %v469, 248
        %vm501 = vcmp.lt.s32.totalorder %v469, %v451
        %vm502 = vcmp.lt.s32.totalorder %v470, %v451
        %vm503 = vcmp.lt.s32.totalorder %v471, %v451
        %vm504 = vcmp.lt.s32.totalorder %v472, %v451
        %vm505 = vcmp.lt.s32.totalorder %v473, %v451
        %vm506 = vcmp.lt.s32.totalorder %v474, %v451
        %vm507 = vcmp.lt.s32.totalorder %v475, %v451
        %vm508 = vcmp.lt.s32.totalorder %v476, %v451
        %vm509 = vcmp.lt.s32.totalorder %v477, %v451
        %vm510 = vcmp.lt.s32.totalorder %v478, %v451
        %vm511 = vcmp.lt.s32.totalorder %v479, %v451
        %vm512 = vcmp.lt.s32.totalorder %v480, %v451
        %vm513 = vcmp.lt.s32.totalorder %v481, %v451
        %vm514 = vcmp.lt.s32.totalorder %v482, %v451
        %vm515 = vcmp.lt.s32.totalorder %v483, %v451
        %vm516 = vcmp.lt.s32.totalorder %v484, %v451
        %vm517 = vcmp.lt.s32.totalorder %v485, %v451
        %vm518 = vcmp.lt.s32.totalorder %v486, %v451
        %vm519 = vcmp.lt.s32.totalorder %v487, %v451
        %vm520 = vcmp.lt.s32.totalorder %v488, %v451
        %vm521 = vcmp.lt.s32.totalorder %v489, %v451
        %vm522 = vcmp.lt.s32.totalorder %v490, %v451
        %vm523 = vcmp.lt.s32.totalorder %v491, %v451
        %vm524 = vcmp.lt.s32.totalorder %v492, %v451
        %vm525 = vcmp.lt.s32.totalorder %v493, %v451
        %vm526 = vcmp.lt.s32.totalorder %v494, %v451
        %vm527 = vcmp.lt.s32.totalorder %v495, %v451
        %vm528 = vcmp.lt.s32.totalorder %v496, %v451
        %vm529 = vcmp.lt.s32.totalorder %v497, %v451
        %vm530 = vcmp.lt.s32.totalorder %v498, %v451
        %vm531 = vcmp.lt.s32.totalorder %v499, %v451
        %vm532 = vcmp.lt.s32.totalorder %v500, %v451
        %vm533 = vmpackc.low %vm501, %vm501
        %vm534 = vmpackc.low %vm502, %vm502
        %vm535 = vmpackc.low %vm503, %vm503
        %vm536 = vmpackc.low %vm504, %vm504
        %vm537 = vmpackc.low %vm505, %vm505
        %vm538 = vmpackc.low %vm506, %vm506
        %vm539 = vmpackc.low %vm507, %vm507
        %vm540 = vmpackc.low %vm508, %vm508
        %vm541 = vmpackc.low %vm509, %vm509
        %vm542 = vmpackc.low %vm510, %vm510
        %vm543 = vmpackc.low %vm511, %vm511
        %vm544 = vmpackc.low %vm512, %vm512
        %vm545 = vmpackc.low %vm513, %vm513
        %vm546 = vmpackc.low %vm514, %vm514
        %vm547 = vmpackc.low %vm515, %vm515
        %vm548 = vmpackc.low %vm516, %vm516
        %vm549 = vmpackc.low %vm517, %vm517
        %vm550 = vmpackc.low %vm518, %vm518
        %vm551 = vmpackc.low %vm519, %vm519
        %vm552 = vmpackc.low %vm520, %vm520
        %vm553 = vmpackc.low %vm521, %vm521
        %vm554 = vmpackc.low %vm522, %vm522
        %vm555 = vmpackc.low %vm523, %vm523
        %vm556 = vmpackc.low %vm524, %vm524
        %vm557 = vmpackc.low %vm525, %vm525
        %vm558 = vmpackc.low %vm526, %vm526
        %vm559 = vmpackc.low %vm527, %vm527
        %vm560 = vmpackc.low %vm528, %vm528
        %vm561 = vmpackc.low %vm529, %vm529
        %vm562 = vmpackc.low %vm530, %vm530
        %vm563 = vmpackc.low %vm531, %vm531
        %vm564 = vmpackc.low %vm532, %vm532
        %v565 = vsel %vm533, %v414, 0
        %v566 = vsel %vm534, %v415, 0
        %v567 = vsel %vm535, %v416, 0
        %v568 = vsel %vm536, %v417, 0
        %v569 = vsel %vm537, %v418, 0
        %v570 = vsel %vm538, %v419, 0
        %v571 = vsel %vm539, %v420, 0
        %v572 = vsel %vm540, %v421, 0
        %v573 = vsel %vm541, %v422, 0
        %v574 = vsel %vm542, %v423, 0
        %v575 = vsel %vm543, %v424, 0
        %v576 = vsel %vm544, %v425, 0
        %v577 = vsel %vm545, %v426, 0
        %v578 = vsel %vm546, %v427, 0
        %v579 = vsel %vm547, %v428, 0
        %v580 = vsel %vm548, %v429, 0
        %v581 = vsel %vm549, %v430, 0
        %v582 = vsel %vm550, %v431, 0
        %v583 = vsel %vm551, %v432, 0
        %v584 = vsel %vm552, %v433, 0
        %v585 = vsel %vm553, %v434, 0
        %v586 = vsel %vm554, %v435, 0
        %v587 = vsel %vm555, %v436, 0
        %v588 = vsel %vm556, %v437, 0
        %v589 = vsel %vm557, %v438, 0
        %v590 = vsel %vm558, %v439, 0
        %v591 = vsel %vm559, %v440, 0
        %v592 = vsel %vm560, %v441, 0
        %v593 = vsel %vm561, %v442, 0
        %v594 = vsel %vm562, %v443, 0
        %v595 = vsel %vm563, %v444, 0
        %v596 = vsel %vm564, %v445, 0
        %v597 = vld [vmem:[#allocation2] sm:$0xff]
        %v598 = vld [vmem:[#allocation2 + $0x8] sm:$0xff]
        %v631 = vunpack.c.l.b16 %v565
        %v632 = vunpack.c.l.b16 %v566
        %v633 = vunpack.c.l.b16 %v567
        %v634 = vunpack.c.l.b16 %v568
        %v635 = vunpack.c.l.b16 %v569
        %v636 = vunpack.c.l.b16 %v570
        %v637 = vunpack.c.l.b16 %v571
        %v638 = vunpack.c.l.b16 %v572
        %v639 = vunpack.c.l.b16 %v573
        %v640 = vunpack.c.l.b16 %v574
        %v641 = vunpack.c.l.b16 %v575
        %v642 = vunpack.c.l.b16 %v576
        %v643 = vunpack.c.l.b16 %v577
        %v644 = vunpack.c.l.b16 %v578
        %v645 = vunpack.c.l.b16 %v579
        %v646 = vunpack.c.l.b16 %v580
        %v647 = vunpack.c.l.b16 %v581
        %v648 = vunpack.c.l.b16 %v582
        %v649 = vunpack.c.l.b16 %v583
        %v650 = vunpack.c.l.b16 %v584
        %v651 = vunpack.c.l.b16 %v585
        %v652 = vunpack.c.l.b16 %v586
        %v653 = vunpack.c.l.b16 %v587
        %v654 = vunpack.c.l.b16 %v588
        %v655 = vunpack.c.l.b16 %v589
        %v656 = vunpack.c.l.b16 %v590
        %v657 = vunpack.c.l.b16 %v591
        %v658 = vunpack.c.l.b16 %v592
        %v659 = vunpack.c.l.b16 %v593
        %v660 = vunpack.c.l.b16 %v594
        %v661 = vunpack.c.l.b16 %v595
        %v662 = vunpack.c.l.b16 %v596
        %v663 = vpack.c.b16 %v632, %v631
        %v664 = vpack.c.b16 %v634, %v633
        %v665 = vpack.c.b16 %v636, %v635
        %v666 = vpack.c.b16 %v638, %v637
        %v667 = vpack.c.b16 %v640, %v639
        %v668 = vpack.c.b16 %v642, %v641
        %v669 = vpack.c.b16 %v644, %v643
        %v670 = vpack.c.b16 %v646, %v645
        %v671 = vpack.c.b16 %v648, %v647
        %v672 = vpack.c.b16 %v650, %v649
        %v673 = vpack.c.b16 %v652, %v651
        %v674 = vpack.c.b16 %v654, %v653
        %v675 = vpack.c.b16 %v656, %v655
        %v676 = vpack.c.b16 %v658, %v657
        %v677 = vpack.c.b16 %v660, %v659
        %v678 = vpack.c.b16 %v662, %v661
        %695 = vmatprep.subr.bf16.mxu0 0
        %696 = vmatpush1.bf16.msra.mxu0 %v663
        %697 = vmatprep.subr.bf16.mxu0 0
        %698 = vmatpush1.bf16.msra.mxu0 %v664
        %699 = vmatprep.subr.bf16.mxu0 0
        %700 = vmatpush1.bf16.msra.mxu0 %v665
        %701 = vmatprep.subr.bf16.mxu0 0
        %702 = vmatpush1.bf16.msra.mxu0 %v666
        %703 = vmatprep.subr.bf16.mxu0 0
        %704 = vmatpush1.bf16.msra.mxu0 %v667
        %705 = vmatprep.subr.bf16.mxu0 0
        %706 = vmatpush1.bf16.msra.mxu0 %v668
        %707 = vmatprep.subr.bf16.mxu0 0
        %708 = vmatpush1.bf16.msra.mxu0 %v669
        %709 = vmatprep.subr.bf16.mxu0 0
        %710 = vmatpush1.bf16.msra.mxu0 %v670
        %711 = vmatprep.subr.bf16.mxu0 0
        %712 = vmatpush1.bf16.msra.mxu0 %v671
        %713 = vmatprep.subr.bf16.mxu0 0
        %714 = vmatpush1.bf16.msra.mxu0 %v672
        %715 = vmatprep.subr.bf16.mxu0 0
        %716 = vmatpush1.bf16.msra.mxu0 %v673
        %717 = vmatprep.subr.bf16.mxu0 0
        %718 = vmatpush1.bf16.msra.mxu0 %v674
        %719 = vmatprep.subr.bf16.mxu0 0
        %720 = vmatpush1.bf16.msra.mxu0 %v675
        %721 = vmatprep.subr.bf16.mxu0 0
        %722 = vmatpush1.bf16.msra.mxu0 %v676
        %723 = vmatprep.subr.bf16.mxu0 0
        %724 = vmatpush1.bf16.msra.mxu0 %v677
        %725 = vmatprep.subr.bf16.mxu0 0
        %726 = vmatpush1.bf16.msra.mxu0 %v678
        %727 = vmatprep.mubr.bf16.mxu0 %v467
        %728 = vmatmul.mubr.bf16.gmra.mrb[0].mxu0 %v466
        %v729 = vpop.f32.mrb[0].mxu0
        %v730 = vadd.f32 0.0, %v729
        %v731 = vpop.f32.mrb[0].mxu0
        %v732 = vpop.f32.mrb[0].mxu0
        %v733 = vadd.f32 0.0, %v732
        %v734 = vpop.f32.mrb[0].mxu0
        %735 = vdwg.mxu0
        %v736 = vadd.f32 %v597, %v730
        %v737 = vadd.f32 %v598, %v733
        %738 = vst [vmem:[#allocation2] sm:$0xff] %v736
        %739 = vst [vmem:[#allocation2 + $0x8] sm:$0xff] %v737
        %p740 = scmp.eq.s32.totalorder %s30, 1
        // Predicated region
        $region69: #{rating_classifier_forward.1} parent=47 // pred_check
          %p741 = pneg %p740
        $region70: #{rating_classifier_forward.1} parent=47 // pred_check_branch
          %743 = sbr.rel (%p741) target = $region72
        $region71: #{rating_classifier_forward.1} parent=47 // pred_region
          %v744 = vld [vmem:[#allocation2] sm:$0xff]
          %v745 = vld [vmem:[#allocation2 + $0x8] sm:$0xff]
          %v746 = vld [vmem:[%s2] sm:$0x1]
          %v748 = vlaneseq
          %v749 = vshrl.u32 %v748, 7
          %v750 = vsub.s32 0, %v749
          %v751 = vrot.slane %v746, %v750
          %v753 = vadd.f32 %v744, %v751
          %v754 = vadd.f32 %v745, %v751
          %v755 = vmax.f32 %v753, 0.0
          %v756 = vmax.f32 %v754, 0.0
          %v757 = vpack.c.bf16 %v756, %v755
          %v758 = vld [vmem:[#allocation7] sm:$0xf]
          %v759 = vld [vmem:[#allocation7 + $0x4] sm:$0xf]
          %v760 = vld [vmem:[#allocation7 + $0x8] sm:$0xf]
          %v761 = vld [vmem:[#allocation7 + $0xc] sm:$0xf]
          %v762 = vld [vmem:[#allocation7 + $0x10] sm:$0xf]
          %v763 = vld [vmem:[#allocation7 + $0x14] sm:$0xf]
          %v764 = vld [vmem:[#allocation7 + $0x18] sm:$0xf]
          %v765 = vld [vmem:[#allocation7 + $0x1c] sm:$0xf]
          %v766 = vld [vmem:[#allocation7 + $0x20] sm:$0xf]
          %v767 = vld [vmem:[#allocation7 + $0x24] sm:$0xf]
          %v768 = vld [vmem:[#allocation7 + $0x28] sm:$0xf]
          %v769 = vld [vmem:[#allocation7 + $0x2c] sm:$0xf]
          %v770 = vld [vmem:[#allocation7 + $0x30] sm:$0xf]
          %v771 = vld [vmem:[#allocation7 + $0x34] sm:$0xf]
          %v772 = vld [vmem:[#allocation7 + $0x38] sm:$0xf]
          %v773 = vld [vmem:[#allocation7 + $0x3c] sm:$0xf]
          %v774 = vld [vmem:[%s4] sm:$0x1]
          %v776 = vlaneseq
          %v777 = vshrl.u32 %v776, 7
          %v778 = vsub.s32 0, %v777
          %v779 = vrot.slane %v774, %v778
          %v797 = vunpack.c.l.b16 %v758
          %v798 = vunpack.c.l.b16 %v759
          %v799 = vunpack.c.l.b16 %v760
          %v800 = vunpack.c.l.b16 %v761
          %v801 = vunpack.c.l.b16 %v762
          %v802 = vunpack.c.l.b16 %v763
          %v803 = vunpack.c.l.b16 %v764
          %v804 = vunpack.c.l.b16 %v765
          %v805 = vunpack.c.l.b16 %v766
          %v806 = vunpack.c.l.b16 %v767
          %v807 = vunpack.c.l.b16 %v768
          %v808 = vunpack.c.l.b16 %v769
          %v809 = vunpack.c.l.b16 %v770
          %v810 = vunpack.c.l.b16 %v771
          %v811 = vunpack.c.l.b16 %v772
          %v812 = vunpack.c.l.b16 %v773
          %v813 = vpack.c.b16 %v798, %v797
          %v814 = vpack.c.b16 %v800, %v799
          %v815 = vpack.c.b16 %v802, %v801
          %v816 = vpack.c.b16 %v804, %v803
          %v817 = vpack.c.b16 %v806, %v805
          %v818 = vpack.c.b16 %v808, %v807
          %v819 = vpack.c.b16 %v810, %v809
          %v820 = vpack.c.b16 %v812, %v811
          %829 = vmatprep.subr.bf16.mxu0 0
          %830 = vmatpush1.bf16.msra.mxu0 %v813
          %831 = vmatprep.subr.bf16.mxu0 0
          %832 = vmatpush1.bf16.msra.mxu0 %v814
          %833 = vmatprep.subr.bf16.mxu0 0
          %834 = vmatpush1.bf16.msra.mxu0 %v815
          %835 = vmatprep.subr.bf16.mxu0 0
          %836 = vmatpush1.bf16.msra.mxu0 %v816
          %837 = vmatprep.subr.bf16.mxu0 0
          %838 = vmatpush1.bf16.msra.mxu0 %v817
          %839 = vmatprep.subr.bf16.mxu0 0
          %840 = vmatpush1.bf16.msra.mxu0 %v818
          %841 = vmatprep.subr.bf16.mxu0 0
          %842 = vmatpush1.bf16.msra.mxu0 %v819
          %843 = vmatprep.subr.bf16.mxu0 0
          %844 = vmatpush1.bf16.msra.mxu0 %v820
          %845 = vmatprep.subr.bf16.mxu0 0
          %846 = vmatpush1.bf16.msra.mxu0 0
          %847 = vmatprep.subr.bf16.mxu0 0
          %848 = vmatpush1.bf16.msra.mxu0 0
          %849 = vmatprep.subr.bf16.mxu0 0
          %850 = vmatpush1.bf16.msra.mxu0 0
          %851 = vmatprep.subr.bf16.mxu0 0
          %852 = vmatpush1.bf16.msra.mxu0 0
          %853 = vmatprep.subr.bf16.mxu0 0
          %854 = vmatpush1.bf16.msra.mxu0 0
          %855 = vmatprep.subr.bf16.mxu0 0
          %856 = vmatpush1.bf16.msra.mxu0 0
          %857 = vmatprep.subr.bf16.mxu0 0
          %858 = vmatpush1.bf16.msra.mxu0 0
          %859 = vmatprep.subr.bf16.mxu0 0
          %860 = vmatpush1.bf16.msra.mxu0 0
          %861 = vmatprep.mubr.bf16.mxu0 0
          %862 = vmatmul.mubr.bf16.gmra.mrb[0].mxu0 %v757
          %v863 = vpop.f32.mrb[0].mxu0
          %v864 = vadd.f32 %v779, %v863
          %v865 = vpop.f32.mrb[0].mxu0
          %v866 = vpop.f32.mrb[0].mxu0
          %v867 = vadd.f32 %v779, %v866
          %v868 = vpop.f32.mrb[0].mxu0
          %869 = vdwg.mxu0
          %v870 = vmax.f32 %v864, 0.0
          %v871 = vmax.f32 %v867, 0.0
          %v872 = vpack.c.bf16 %v871, %v870
          %v873 = vld [vmem:[#allocation8] sm:$0xf]
          %v874 = vld [vmem:[#allocation8 + $0x4] sm:$0xf]
          %v875 = vld [vmem:[#allocation8 + $0x8] sm:$0xf]
          %v876 = vld [vmem:[#allocation8 + $0xc] sm:$0xf]
          %v877 = vld [vmem:[#allocation8 + $0x10] sm:$0xf]
          %v878 = vld [vmem:[#allocation8 + $0x14] sm:$0xf]
          %v879 = vld [vmem:[#allocation8 + $0x18] sm:$0xf]
          %v880 = vld [vmem:[#allocation8 + $0x1c] sm:$0xf]
          %v881 = vld [vmem:[#allocation8 + $0x20] sm:$0xf]
          %v882 = vld [vmem:[#allocation8 + $0x24] sm:$0xf]
          %v883 = vld [vmem:[#allocation8 + $0x28] sm:$0xf]
          %v884 = vld [vmem:[#allocation8 + $0x2c] sm:$0xf]
          %v885 = vld [vmem:[#allocation8 + $0x30] sm:$0xf]
          %v886 = vld [vmem:[#allocation8 + $0x34] sm:$0xf]
          %v887 = vld [vmem:[#allocation8 + $0x38] sm:$0xf]
          %v888 = vld [vmem:[#allocation8 + $0x3c] sm:$0xf]
          %v889 = vld [vmem:[%s6] sm:$0x1]
          %v891 = vlaneseq
          %v892 = vshrl.u32 %v891, 7
          %v893 = vsub.s32 0, %v892
          %v894 = vrot.slane %v889, %v893
          %v912 = vunpack.c.l.b16 %v873
          %v913 = vunpack.c.l.b16 %v874
          %v914 = vunpack.c.l.b16 %v875
          %v915 = vunpack.c.l.b16 %v876
          %v916 = vunpack.c.l.b16 %v877
          %v917 = vunpack.c.l.b16 %v878
          %v918 = vunpack.c.l.b16 %v879
          %v919 = vunpack.c.l.b16 %v880
          %v920 = vunpack.c.l.b16 %v881
          %v921 = vunpack.c.l.b16 %v882
          %v922 = vunpack.c.l.b16 %v883
          %v923 = vunpack.c.l.b16 %v884
          %v924 = vunpack.c.l.b16 %v885
          %v925 = vunpack.c.l.b16 %v886
          %v926 = vunpack.c.l.b16 %v887
          %v927 = vunpack.c.l.b16 %v888
          %v928 = vpack.c.b16 %v913, %v912
          %v929 = vpack.c.b16 %v915, %v914
          %v930 = vpack.c.b16 %v917, %v916
          %v931 = vpack.c.b16 %v919, %v918
          %v932 = vpack.c.b16 %v921, %v920
          %v933 = vpack.c.b16 %v923, %v922
          %v934 = vpack.c.b16 %v925, %v924
          %v935 = vpack.c.b16 %v927, %v926
          %944 = vmatprep.subr.bf16.mxu0 0
          %945 = vmatpush1.bf16.msra.mxu0 %v928
          %946 = vmatprep.subr.bf16.mxu0 0
          %947 = vmatpush1.bf16.msra.mxu0 %v929
          %948 = vmatprep.subr.bf16.mxu0 0
          %949 = vmatpush1.bf16.msra.mxu0 %v930
          %950 = vmatprep.subr.bf16.mxu0 0
          %951 = vmatpush1.bf16.msra.mxu0 %v931
          %952 = vmatprep.subr.bf16.mxu0 0
          %953 = vmatpush1.bf16.msra.mxu0 %v932
          %954 = vmatprep.subr.bf16.mxu0 0
          %955 = vmatpush1.bf16.msra.mxu0 %v933
          %956 = vmatprep.subr.bf16.mxu0 0
          %957 = vmatpush1.bf16.msra.mxu0 %v934
          %958 = vmatprep.subr.bf16.mxu0 0
          %959 = vmatpush1.bf16.msra.mxu0 %v935
          %960 = vmatprep.subr.bf16.mxu0 0
          %961 = vmatpush1.bf16.msra.mxu0 0
          %962 = vmatprep.subr.bf16.mxu0 0
          %963 = vmatpush1.bf16.msra.mxu0 0
          %964 = vmatprep.subr.bf16.mxu0 0
          %965 = vmatpush1.bf16.msra.mxu0 0
          %966 = vmatprep.subr.bf16.mxu0 0
          %967 = vmatpush1.bf16.msra.mxu0 0
          %968 = vmatprep.subr.bf16.mxu0 0
          %969 = vmatpush1.bf16.msra.mxu0 0
          %970 = vmatprep.subr.bf16.mxu0 0
          %971 = vmatpush1.bf16.msra.mxu0 0
          %972 = vmatprep.subr.bf16.mxu0 0
          %973 = vmatpush1.bf16.msra.mxu0 0
          %974 = vmatprep.subr.bf16.mxu0 0
          %975 = vmatpush1.bf16.msra.mxu0 0
          %976 = vmatprep.mubr.bf16.mxu0 0
          %977 = vmatmul.mubr.bf16.gmra.mrb[0].mxu0 %v872
          %v978 = vpop.f32.mrb[0].mxu0
          %v979 = vadd.f32 %v894, %v978
          %v980 = vpop.f32.mrb[0].mxu0
          %v981 = vpop.f32.mrb[0].mxu0
          %v982 = vadd.f32 %v894, %v981
          %v983 = vpop.f32.mrb[0].mxu0
          %984 = vdwg.mxu0
          %985 = vst [vmem:[%s397] sm:$0xff] %v979
          %986 = vst [vmem:[%s397 + $0x8] sm:$0xff] %v982
        $region72: #{rating_classifier_forward.1} parent=47 // pred_fallthru
          _
        %s987 = smul.u32 2, %s29
        %p988 = scmp.lt.s32.totalorder %s987, 3
        %s989 = scalar_select %p988, %s987, 3
        %s990 = smul.addr %s989, 8
        %s991 = scalar_lea.vmem %s7, %s990
        // Predicated region
        $region73: #{rating_classifier_forward.1} parent=47 // pred_check
          %p992 = pneg %p214
        $region74: #{rating_classifier_forward.1} parent=47 // pred_check_branch
          %994 = sbr.rel (%p992) target = $region76
        $region75: #{rating_classifier_forward.1} parent=47 // pred_region
          %s995 = smul.u32 2, %s29
        $region76: #{rating_classifier_forward.1} parent=47 // pred_fallthru
          _
      $region48: #{rating_classifier_forward.1} parent=5 // pred_fallthru
        _
      %p996 = scmp.le.s32.totalorder 2, %s20
      // Predicated region
      $region77: #{rating_classifier_forward.1} parent=5 // pred_check
        %p997 = pneg %p996
      $region78: #{rating_classifier_forward.1} parent=5 // pred_check_branch
        %999 = sbr.rel (%p997) target = $region80
      $region79: #{rating_classifier_forward.1} parent=5 // pred_region
        %s1000 = ssub.s32 %s20, 2
        // Predicated region
        $region81: #{rating_classifier_forward.1} parent=79 // pred_check
          %p1001 = pneg %p220
        $region82: #{rating_classifier_forward.1} parent=79 // pred_check_branch
          %1003 = sbr.rel (%p1001) target = $region84
        $region83: #{rating_classifier_forward.1} parent=79 // pred_region
          %s1004 = smul.u32 2, %s31
          %p1005 = scmp.lt.s32.totalorder %s1004, 3
          %s1006 = scalar_select %p1005, %s1004, 3
          %s1007 = smul.addr %s1006, 8
          %s1008 = scalar_lea.vmem %s7, %s1007
        $region84: #{rating_classifier_forward.1} parent=79 // pred_fallthru
          _
      $region80: #{rating_classifier_forward.1} parent=5 // pred_fallthru
        _
    $region6: #{rating_classifier_forward.1} parent=1 // loop_footer
      %s24 = sadd.s32 1, %s20
    $region7: #{rating_classifier_forward.1} parent=1 // loop_footer_branch
      %19 = sbr.rel target = $region3
    $region8: #{rating_classifier_forward.1} parent=1 // loop_exit
      _
    %1009 = vsyncpa [#allocation4], 1
    %s1010 = scalar_lea.sflag [#allocation4], 1
    %1011 = vsyncpa %s1010, 1
    %1012 = vsyncpa [#allocation6], 1
    %s1013 = scalar_lea.sflag [#allocation6], 1
    %1014 = vsyncpa %s1013, 1
    %1015 = vsyncpa [#allocation9], 1

</llo_original>
